<compile_context>
chip_gen: v7x
topology: tpu7x:2x2x1
jax: 0.10.0
libtpu: 0.0.40
codegen_flags: <defaults>
</compile_context>

<pallas_src>
import functools

import jax
import jax.numpy as jnp
from jax.experimental import pallas as pl
from jax.experimental.pallas import tpu as pltpu


def _recycling_kernel(m_ref, z_ref, xr_ref, xc_ref,
                      lower_ref, wd_ref, bt_ref,
                      gm_ref, bm_ref, gz_ref,
                      m_out_ref, z_out_ref, *, eps):
    TI = z_ref.shape[1]
    N = z_ref.shape[2]
    c_z = z_ref.shape[3]
    c_m = m_ref.shape[2]
    num_bins = wd_ref.shape[0]

    # ---- pairwise squared distances as a lane-dense [TI, N] slab -----------
    x_i = xr_ref[0].astype(jnp.float32)             # [TI, 3]  rows of this tile
    x_jT = xc_ref[0].astype(jnp.float32)            # [3, N]   all residues (pre-T)
    d = jnp.zeros((TI, N), jnp.float32)
    for k in range(3):                              # unrolled VPU slabs
        diff = x_i[:, k:k + 1] - x_jT[k:k + 1, :]   # [TI,1] - [1,N] -> [TI,N]
        d = d + diff * diff

    # ---- distogram Linear via first-difference weights ----------------------
    # sum_{k : d > lower_k} (W[k] - W[k-1]) == W[bin(d)]: one compare + cast
    # instead of two compares + AND + cast (see header caveat).
    lower = lower_ref[...]                          # [1, num_bins] (f32)
    cmp = (d[:, :, None] > lower).reshape(TI * N, num_bins).astype(wd_ref.dtype)
    lin = jnp.dot(cmp, wd_ref[...], preferred_element_type=jnp.float32)
    # bt = linear_b + ln_z_b folded into a single broadcast add.
    lin = lin.reshape(TI, N, c_z) + bt_ref[...].astype(jnp.float32)

    # ---- LayerNorm(z_prev) over c_z -----------------------------------------
    # Centered two-pass variance; z_ref is re-read per pass in its native
    # dtype (cast per-vreg) so no full f32 copy of the tile is stored.
    inv_cz = jnp.float32(1.0 / c_z)
    mu = jnp.sum(z_ref[0].astype(jnp.float32), axis=-1, keepdims=True) * inv_cz
    ctr = z_ref[0].astype(jnp.float32) - mu
    var = jnp.sum(ctr * ctr, axis=-1, keepdims=True) * inv_cz
    inv_std = jax.lax.rsqrt(var + eps)              # [TI, N, 1]
    gz = gz_ref[...].astype(jnp.float32)            # [1, c_z]
    z_out_ref[0] = ((z_ref[0].astype(jnp.float32) - mu) * inv_std * gz
                    + lin).astype(z_out_ref.dtype)

    # ---- LayerNorm(m0_prev) over c_m (small tile, centered two-pass) --------
    m = m_ref[0].astype(jnp.float32)                # [TI, c_m]
    inv_cm = jnp.float32(1.0 / c_m)
    mu_m = jnp.sum(m, axis=-1, keepdims=True) * inv_cm
    dm = m - mu_m
    var_m = jnp.sum(dm * dm, axis=-1, keepdims=True) * inv_cm
    m_out_ref[0] = (dm * jax.lax.rsqrt(var_m + eps)
                    * gm_ref[...].astype(jnp.float32)
                    + bm_ref[...].astype(jnp.float32)).astype(m_out_ref.dtype)


def _round_up(x, m):
    return (x + m - 1) // m * m


def _vmem_capacity_bytes():
    """Physical VMEM per TensorCore; conservative 64 MiB (v7x) fallback."""
    try:
        info = pltpu.get_tpu_info()
        cap = getattr(info, "vmem_capacity_bytes", None)
        if cap:
            return int(cap)
    except Exception:
        pass
    return 64 * 1024 * 1024


def _working_set_bytes(TI, N, c_z, num_bins, z_itemsize, w_itemsize):
    """Scoped-VMEM estimate for one grid step (actual live set, not a fudge)."""
    z_tile = TI * N * c_z * z_itemsize
    f32_slab = TI * N * c_z * 4
    cmp_slab = TI * N * _round_up(num_bins, 128) * max(w_itemsize, 2)
    row_slabs = 8 * TI * N * 4                       # d / mu / var / broadcasts
    return (4 * z_tile            # 2x in + 2x out double-buffered z tiles
            + 2 * f32_slab        # lin accumulator + one transient f32 LN slab
            + cmp_slab            # lane-padded compare/one-hot slab
            + row_slabs
            + (2 << 20))          # params, residuals, headroom


def _choose_row_tile(N, c_z, num_bins, z_itemsize, w_itemsize,
                     tile_target, vmem_ceiling):
    """Largest multiple-of-8 divisor of N meeting tile and VMEM budgets."""
    cands = [t for t in range(8, N + 1, 8) if N % t == 0] or [N]
    good = [t for t in cands
            if (t * N * c_z * z_itemsize <= tile_target
                and _working_set_bytes(t, N, c_z, num_bins,
                                       z_itemsize, w_itemsize) <= vmem_ceiling)]
    return max(good) if good else min(cands)


def recycling_embedder(m0_prev, z_prev, x_prev, params, *,
                       min_bin, max_bin, num_bins, inf, eps=1e-5,
                       row_tile=None):
    B, N, c_m = m0_prev.shape
    c_z = z_prev.shape[-1]
    # `inf` (the d < upper[-1] bound) is not needed with first-difference
    # weights; behavior only differs for d >= inf, i.e. distances >= 10 km.
    del inf

    # Distogram thresholds in f32 regardless of input dtype (stable binning).
    bins = jnp.linspace(min_bin, max_bin, num_bins, dtype=jnp.float32)
    lower = jnp.square(bins).reshape(1, num_bins)

    # Linear(num_bins -> c_z) recast as first-difference weights; the two
    # row-broadcast biases (linear_b, ln_z_b) folded into one vector.
    w = params["linear_w"]                                      # [num_bins, c_z]
    w_diff = jnp.concatenate([w[:1], w[1:] - w[:-1]], axis=0)
    b_total = (params["linear_b"] + params["ln_z_b"]).reshape(1, c_z)
    gm = params["ln_m_w"].reshape(1, c_m)
    bm = params["ln_m_b"].reshape(1, c_m)
    gz = params["ln_z_w"].reshape(1, c_z)

    # x passed twice: row tiles [B, N, 3] and pre-transposed columns [B, 3, N]
    # (tiny XLA transpose; keeps the kernel free of in-kernel relayouts).
    xT_prev = jnp.swapaxes(x_prev, -1, -2)

    # Generation-aware tiling / scoped-VMEM budget.
    z_itemsize = jnp.dtype(z_prev.dtype).itemsize
    w_itemsize = jnp.dtype(w.dtype).itemsize
    vmem_cap = _vmem_capacity_bytes()
    if vmem_cap >= 96 * 1024 * 1024:       # v5e / v6e: 128 MiB per TensorCore
        tile_target = 7 << 20              # ~7 MiB z tiles (TI=64 @ N=384 bf16)
        vmem_ceiling = 100 * 1024 * 1024
    else:                                  # v7x: 64 MiB per TensorCore
        tile_target = 7 << 19              # ~3.5 MiB z tiles
        vmem_ceiling = 56 * 1024 * 1024

    TI = row_tile if row_tile is not None else _choose_row_tile(
        N, c_z, num_bins, z_itemsize, w_itemsize, tile_target, vmem_ceiling)
    assert N % TI == 0, "row_tile must divide N_res"
    NT = N // TI

    vmem_limit = int(min(vmem_ceiling,
                         max(32 * 1024 * 1024,
                             _working_set_bytes(TI, N, c_z, num_bins,
                                                z_itemsize, w_itemsize))))

    kernel = functools.partial(_recycling_kernel, eps=float(eps))

    grid_spec = pltpu.PrefetchScalarGridSpec(
        num_scalar_prefetch=0,
        grid=(B, NT),
        in_specs=[
            pl.BlockSpec((1, TI, c_m), lambda bb, ii: (bb, ii, 0)),        # m0_prev tile
            pl.BlockSpec((1, TI, N, c_z), lambda bb, ii: (bb, ii, 0, 0)),  # z_prev tile
            pl.BlockSpec((1, TI, 3), lambda bb, ii: (bb, ii, 0)),          # x rows (tile)
            pl.BlockSpec((1, 3, N), lambda bb, ii: (bb, 0, 0)),            # x cols (full, T)
            pl.BlockSpec((1, num_bins), lambda bb, ii: (0, 0)),            # lower
            pl.BlockSpec((num_bins, c_z), lambda bb, ii: (0, 0)),          # W first-diff
            pl.BlockSpec((1, c_z), lambda bb, ii: (0, 0)),                 # linear_b + ln_z_b
            pl.BlockSpec((1, c_m), lambda bb, ii: (0, 0)),                 # ln_m gamma
            pl.BlockSpec((1, c_m), lambda bb, ii: (0, 0)),                 # ln_m beta
            pl.BlockSpec((1, c_z), lambda bb, ii: (0, 0)),                 # ln_z gamma
        ],
        out_specs=[
            pl.BlockSpec((1, TI, c_m), lambda bb, ii: (bb, ii, 0)),        # m0_update
            pl.BlockSpec((1, TI, N, c_z), lambda bb, ii: (bb, ii, 0, 0)),  # z_update
        ],
    )

    m_itemsize = jnp.dtype(m0_prev.dtype).itemsize
    cost = pl.CostEstimate(
        flops=int(2 * B * N * N * num_bins * c_z        # distogram matmul
                  + (9 + num_bins) * B * N * N          # distances + binning
                  + 12 * B * N * N * c_z                # LayerNorm(z) + add
                  + 10 * B * N * c_m),                  # LayerNorm(m)
        transcendentals=int(B * N * N + B * N),         # rsqrt per row
        bytes_accessed=int(2 * B * N * N * c_z * z_itemsize
                           + 2 * B * N * c_m * m_itemsize
                           + 2 * B * N * 3 * jnp.dtype(x_prev.dtype).itemsize),
    )

    m_out, z_out = pl.pallas_call(
        kernel,
        out_shape=(
            jax.ShapeDtypeStruct((B, N, c_m), m0_prev.dtype),
            jax.ShapeDtypeStruct((B, N, N, c_z), z_prev.dtype),
        ),
        grid_spec=grid_spec,
        compiler_params=pltpu.CompilerParams(
            dimension_semantics=("parallel", "parallel"),
            vmem_limit_bytes=vmem_limit),
        cost_estimate=cost,
    )(m0_prev, z_prev, x_prev, xT_prev, lower, w_diff, b_total, gm, bm, gz)
    return m_out, z_out


def _reference(m0_prev, z_prev, x_prev, params, *,
               min_bin, max_bin, num_bins, inf, eps=1e-5):
    """Pure-JAX reference of the PyTorch forward pass (for a sanity check)."""
    bins = jnp.linspace(min_bin, max_bin, num_bins, dtype=jnp.float32)
    lower = bins ** 2
    upper = jnp.concatenate([lower[1:], jnp.array([inf], jnp.float32)])
    d = jnp.sum((x_prev[..., :, None, :] - x_prev[..., None, :, :]) ** 2,
                axis=-1, keepdims=True)
    oh = jnp.logical_and(d > lower, d < upper).astype(jnp.float32)
    lin = jnp.einsum("bijk,kc->bijc", oh, params["linear_w"]) + params["linear_b"]

    def ln(x, g, beta):
        mu = jnp.mean(x, -1, keepdims=True)
        var = jnp.mean((x - mu) ** 2, -1, keepdims=True)
        return (x - mu) * jax.lax.rsqrt(var + eps) * g + beta

    z_upd = lin + ln(z_prev, params["ln_z_w"], params["ln_z_b"])
    m_upd = ln(m0_prev, params["ln_m_w"], params["ln_m_b"])
    return m_upd, z_upd


if __name__ == "__main__":
    # Small shapes consistent with the module's forward signature.
    B, N, c_m, c_z, num_bins = 2, 8, 16, 8, 8
    min_bin, max_bin, inf = 3.25, 20.75, 1e8

    key = jax.random.PRNGKey(0)
    k1, k2, k3, k4 = jax.random.split(key, 4)
    m0_prev = jax.random.normal(k1, (B, N, c_m), jnp.float32)
    z_prev = jax.random.normal(k2, (B, N, N, c_z), jnp.float32)
    x_prev = 10.0 * jax.random.normal(k3, (B, N, 3), jnp.float32)

    # Deterministic synthetic parameters (shapes from __init__):
    #   Linear(num_bins -> c_z) weight/bias, LayerNorm(c_m), LayerNorm(c_z).
    params = {
        "linear_w": 0.02 * jax.random.normal(k4, (num_bins, c_z), jnp.float32),
        "linear_b": jnp.zeros((c_z,), jnp.float32),
        "ln_m_w": jnp.ones((c_m,), jnp.float32),
        "ln_m_b": jnp.zeros((c_m,), jnp.float32),
        "ln_z_w": jnp.ones((c_z,), jnp.float32),
        "ln_z_b": jnp.zeros((c_z,), jnp.float32),
    }

    m_out, z_out = recycling_embedder(
        m0_prev, z_prev, x_prev, params,
        min_bin=min_bin, max_bin=max_bin, num_bins=num_bins, inf=inf)
    jax.block_until_ready((m_out, z_out))

    assert m_out.shape == (B, N, c_m)
    assert z_out.shape == (B, N, N, c_z)

    m_ref, z_ref = _reference(
        m0_prev, z_prev, x_prev, params,
        min_bin=min_bin, max_bin=max_bin, num_bins=num_bins, inf=inf)
    assert jnp.allclose(m_out, m_ref, atol=1e-3, rtol=1e-3)
    # z tolerance slightly wider: first-difference weights telescope W[bin]
    # from up to num_bins MXU terms, each with (worst case bf16-pass) rounding.
    assert jnp.allclose(z_out, z_ref, atol=2e-3, rtol=2e-3)
    print("KERNEL_OK")
</pallas_src>

<mosaic_0001>
module attributes {stable_mosaic.version = 11 : i64} {
  func.func @_recycling_kernel(%arg0: i32, %arg1: i32, %arg2: memref<1x8x16xf32, #tpu.memory_space<vmem>>, %arg3: memref<1x8x8x8xf32, #tpu.memory_space<vmem>>, %arg4: memref<1x8x3xf32, #tpu.memory_space<vmem>>, %arg5: memref<1x3x8xf32, #tpu.memory_space<vmem>>, %arg6: memref<1x8xf32, #tpu.memory_space<vmem>>, %arg7: memref<8x8xf32, #tpu.memory_space<vmem>>, %arg8: memref<1x8xf32, #tpu.memory_space<vmem>>, %arg9: memref<1x16xf32, #tpu.memory_space<vmem>>, %arg10: memref<1x16xf32, #tpu.memory_space<vmem>>, %arg11: memref<1x8xf32, #tpu.memory_space<vmem>>, %arg12: memref<1x8x16xf32, #tpu.memory_space<vmem>>, %arg13: memref<1x8x8x8xf32, #tpu.memory_space<vmem>>) attributes {dimension_semantics = [#tpu.dimension_semantics<parallel>, #tpu.dimension_semantics<parallel>], iteration_bounds = array<i64: 2, 1>, scalar_prefetch = 0 : i64, scratch_operands = 0 : i64, tpu.core_type = #tpu.core_type<tc>, window_params = [{transform_indices = @transform_0, window_bounds = array<i64: 1, 8, 16>}, {transform_indices = @transform_1, window_bounds = array<i64: 1, 8, 8, 8>}, {transform_indices = @transform_2, window_bounds = array<i64: 1, 8, 3>}, {transform_indices = @transform_3, window_bounds = array<i64: 1, 3, 8>}, {pipeline_mode = #tpu.pipeline_mode<synchronous>, transform_indices = @transform_4, window_bounds = array<i64: 1, 8>}, {pipeline_mode = #tpu.pipeline_mode<synchronous>, transform_indices = @transform_5, window_bounds = array<i64: 8, 8>}, {pipeline_mode = #tpu.pipeline_mode<synchronous>, transform_indices = @transform_6, window_bounds = array<i64: 1, 8>}, {pipeline_mode = #tpu.pipeline_mode<synchronous>, transform_indices = @transform_7, window_bounds = array<i64: 1, 16>}, {pipeline_mode = #tpu.pipeline_mode<synchronous>, transform_indices = @transform_8, window_bounds = array<i64: 1, 16>}, {pipeline_mode = #tpu.pipeline_mode<synchronous>, transform_indices = @transform_9, window_bounds = array<i64: 1, 8>}, {transform_indices = @transform_10, window_bounds = array<i64: 1, 8, 16>}, {transform_indices = @transform_11, window_bounds = array<i64: 1, 8, 8, 8>}]} {
    %c0 = arith.constant 0 : index
    %c0_0 = arith.constant 0 : index
    %c0_1 = arith.constant 0 : index
    %0 = vector.load %arg4[%c0, %c0_0, %c0_1] : memref<1x8x3xf32, #tpu.memory_space<vmem>>, vector<1x8x3xf32>
    %1 = vector.shape_cast %0 : vector<1x8x3xf32> to vector<8x3xf32>
    %c0_2 = arith.constant 0 : index
    %c0_3 = arith.constant 0 : index
    %c0_4 = arith.constant 0 : index
    %2 = vector.load %arg5[%c0_2, %c0_3, %c0_4] : memref<1x3x8xf32, #tpu.memory_space<vmem>>, vector<1x3x8xf32>
    %3 = vector.shape_cast %2 : vector<1x3x8xf32> to vector<3x8xf32>
    %cst = arith.constant 0.000000e+00 : f32
    %4 = vector.broadcast %cst : f32 to vector<8x8xf32>
    %5 = vector.extract_strided_slice %1 {offsets = [0, 0], sizes = [8, 1], strides = [1, 1]} : vector<8x3xf32> to vector<8x1xf32>
    %6 = vector.extract_strided_slice %3 {offsets = [0, 0], sizes = [1, 8], strides = [1, 1]} : vector<3x8xf32> to vector<1x8xf32>
    %7 = vector.broadcast %5 : vector<8x1xf32> to vector<8x8xf32>
    %8 = vector.broadcast %6 : vector<1x8xf32> to vector<8x8xf32>
    %9 = arith.subf %7, %8 : vector<8x8xf32>
    %10 = arith.mulf %9, %9 : vector<8x8xf32>
    %11 = arith.addf %4, %10 : vector<8x8xf32>
    %12 = vector.extract_strided_slice %1 {offsets = [0, 1], sizes = [8, 1], strides = [1, 1]} : vector<8x3xf32> to vector<8x1xf32>
    %13 = vector.extract_strided_slice %3 {offsets = [1, 0], sizes = [1, 8], strides = [1, 1]} : vector<3x8xf32> to vector<1x8xf32>
    %14 = vector.broadcast %12 : vector<8x1xf32> to vector<8x8xf32>
    %15 = vector.broadcast %13 : vector<1x8xf32> to vector<8x8xf32>
    %16 = arith.subf %14, %15 : vector<8x8xf32>
    %17 = arith.mulf %16, %16 : vector<8x8xf32>
    %18 = arith.addf %11, %17 : vector<8x8xf32>
    %19 = vector.extract_strided_slice %1 {offsets = [0, 2], sizes = [8, 1], strides = [1, 1]} : vector<8x3xf32> to vector<8x1xf32>
    %20 = vector.extract_strided_slice %3 {offsets = [2, 0], sizes = [1, 8], strides = [1, 1]} : vector<3x8xf32> to vector<1x8xf32>
    %21 = vector.broadcast %19 : vector<8x1xf32> to vector<8x8xf32>
    %22 = vector.broadcast %20 : vector<1x8xf32> to vector<8x8xf32>
    %23 = arith.subf %21, %22 : vector<8x8xf32>
    %24 = arith.mulf %23, %23 : vector<8x8xf32>
    %25 = arith.addf %18, %24 : vector<8x8xf32>
    %c0_5 = arith.constant 0 : index
    %c0_6 = arith.constant 0 : index
    %26 = vector.load %arg6[%c0_5, %c0_6] : memref<1x8xf32, #tpu.memory_space<vmem>>, vector<1x8xf32>
    %27 = vector.shape_cast %25 : vector<8x8xf32> to vector<8x8x1xf32>
    %28 = vector.shape_cast %26 : vector<1x8xf32> to vector<1x1x8xf32>
    %29 = vector.broadcast %27 : vector<8x8x1xf32> to vector<8x8x8xf32>
    %30 = vector.broadcast %28 : vector<1x1x8xf32> to vector<8x8x8xf32>
    %31 = arith.cmpf ogt, %29, %30 : vector<8x8x8xf32>
    %32 = vector.shape_cast %31 : vector<8x8x8xi1> to vector<64x8xi1>
    %33 = arith.extui %32 : vector<64x8xi1> to vector<64x8xi32>
    %34 = arith.sitofp %33 : vector<64x8xi32> to vector<64x8xf32>
    %c0_7 = arith.constant 0 : index
    %c0_8 = arith.constant 0 : index
    %35 = vector.load %arg7[%c0_7, %c0_8] : memref<8x8xf32, #tpu.memory_space<vmem>>, vector<8x8xf32>
    %cst_9 = arith.constant dense<0.000000e+00> : vector<64x8xf32>
    %36 = tpu.matmul %34, %35, %cst_9 {dimension_numbers = #tpu.dot_dimension_numbers<[1], [0], [0], [1], [0, 0, 1, 1], [], []>} : vector<64x8xf32>, vector<8x8xf32>, vector<64x8xf32> -> vector<64x8xf32>
    %37 = vector.shape_cast %36 : vector<64x8xf32> to vector<8x8x8xf32>
    %c0_10 = arith.constant 0 : index
    %c0_11 = arith.constant 0 : index
    %38 = vector.load %arg8[%c0_10, %c0_11] : memref<1x8xf32, #tpu.memory_space<vmem>>, vector<1x8xf32>
    %39 = vector.shape_cast %38 : vector<1x8xf32> to vector<1x1x8xf32>
    %40 = vector.broadcast %39 : vector<1x1x8xf32> to vector<8x8x8xf32>
    %41 = arith.addf %37, %40 : vector<8x8x8xf32>
    %c0_12 = arith.constant 0 : index
    %c0_13 = arith.constant 0 : index
    %c0_14 = arith.constant 0 : index
    %c0_15 = arith.constant 0 : index
    %42 = vector.load %arg3[%c0_12, %c0_13, %c0_14, %c0_15] : memref<1x8x8x8xf32, #tpu.memory_space<vmem>>, vector<1x8x8x8xf32>
    %43 = vector.shape_cast %42 : vector<1x8x8x8xf32> to vector<8x8x8xf32>
    %cst_16 = arith.constant dense<0.000000e+00> : vector<8x8xf32>
    %44 = vector.multi_reduction <add>, %43, %cst_16 [2] : vector<8x8x8xf32> to vector<8x8xf32>
    %45 = vector.shape_cast %44 : vector<8x8xf32> to vector<8x8x1xf32>
    %cst_17 = arith.constant 1.250000e-01 : f32
    %46 = vector.broadcast %cst_17 : f32 to vector<8x8x1xf32>
    %47 = arith.mulf %45, %46 : vector<8x8x1xf32>
    %c0_18 = arith.constant 0 : index
    %c0_19 = arith.constant 0 : index
    %c0_20 = arith.constant 0 : index
    %c0_21 = arith.constant 0 : index
    %48 = vector.load %arg3[%c0_18, %c0_19, %c0_20, %c0_21] : memref<1x8x8x8xf32, #tpu.memory_space<vmem>>, vector<1x8x8x8xf32>
    %49 = vector.shape_cast %48 : vector<1x8x8x8xf32> to vector<8x8x8xf32>
    %50 = vector.broadcast %47 : vector<8x8x1xf32> to vector<8x8x8xf32>
    %51 = arith.subf %49, %50 : vector<8x8x8xf32>
    %52 = arith.mulf %51, %51 : vector<8x8x8xf32>
    %cst_22 = arith.constant dense<0.000000e+00> : vector<8x8xf32>
    %53 = vector.multi_reduction <add>, %52, %cst_22 [2] : vector<8x8x8xf32> to vector<8x8xf32>
    %54 = vector.shape_cast %53 : vector<8x8xf32> to vector<8x8x1xf32>
    %cst_23 = arith.constant 1.250000e-01 : f32
    %55 = vector.broadcast %cst_23 : f32 to vector<8x8x1xf32>
    %56 = arith.mulf %54, %55 : vector<8x8x1xf32>
    %cst_24 = arith.constant 9.99999974E-6 : f32
    %57 = vector.broadcast %cst_24 : f32 to vector<8x8x1xf32>
    %58 = arith.addf %56, %57 : vector<8x8x1xf32>
    %59 = math.rsqrt %58 : vector<8x8x1xf32>
    %c0_25 = arith.constant 0 : index
    %c0_26 = arith.constant 0 : index
    %60 = vector.load %arg11[%c0_25, %c0_26] : memref<1x8xf32, #tpu.memory_space<vmem>>, vector<1x8xf32>
    %c0_27 = arith.constant 0 : index
    %c0_28 = arith.constant 0 : index
    %c0_29 = arith.constant 0 : index
    %c0_30 = arith.constant 0 : index
    %61 = vector.load %arg3[%c0_27, %c0_28, %c0_29, %c0_30] : memref<1x8x8x8xf32, #tpu.memory_space<vmem>>, vector<1x8x8x8xf32>
    %62 = vector.shape_cast %61 : vector<1x8x8x8xf32> to vector<8x8x8xf32>
    %63 = vector.broadcast %47 : vector<8x8x1xf32> to vector<8x8x8xf32>
    %64 = arith.subf %62, %63 : vector<8x8x8xf32>
    %65 = vector.broadcast %59 : vector<8x8x1xf32> to vector<8x8x8xf32>
    %66 = arith.mulf %64, %65 : vector<8x8x8xf32>
    %67 = vector.shape_cast %60 : vector<1x8xf32> to vector<1x1x8xf32>
    %68 = vector.broadcast %67 : vector<1x1x8xf32> to vector<8x8x8xf32>
    %69 = arith.mulf %66, %68 : vector<8x8x8xf32>
    %70 = arith.addf %69, %41 : vector<8x8x8xf32>
    %c0_31 = arith.constant 0 : index
    %c0_32 = arith.constant 0 : index
    %c0_33 = arith.constant 0 : index
    %c0_34 = arith.constant 0 : index
    %71 = vector.load %arg13[%c0_31, %c0_32, %c0_33, %c0_34] : memref<1x8x8x8xf32, #tpu.memory_space<vmem>>, vector<1x8x8x8xf32>
    %72 = vector.shape_cast %71 : vector<1x8x8x8xf32> to vector<8x8x8xf32>
    %73 = vector.shape_cast %70 : vector<8x8x8xf32> to vector<1x8x8x8xf32>
    tpu.vector_store %arg13[%c0_31, %c0_32, %c0_33, %c0_34], %73 {strides = array<i32>} : memref<1x8x8x8xf32, #tpu.memory_space<vmem>>, vector<1x8x8x8xf32>,
    %c0_35 = arith.constant 0 : index
    %c0_36 = arith.constant 0 : index
    %c0_37 = arith.constant 0 : index
    %74 = vector.load %arg2[%c0_35, %c0_36, %c0_37] : memref<1x8x16xf32, #tpu.memory_space<vmem>>, vector<1x8x16xf32>
    %75 = vector.shape_cast %74 : vector<1x8x16xf32> to vector<8x16xf32>
    %cst_38 = arith.constant dense<0.000000e+00> : vector<8xf32>
    %76 = vector.multi_reduction <add>, %75, %cst_38 [1] : vector<8x16xf32> to vector<8xf32>
    %77 = vector.shape_cast %76 : vector<8xf32> to vector<8x1xf32>
    %cst_39 = arith.constant 6.250000e-02 : f32
    %78 = vector.broadcast %cst_39 : f32 to vector<8x1xf32>
    %79 = arith.mulf %77, %78 : vector<8x1xf32>
    %80 = vector.broadcast %79 : vector<8x1xf32> to vector<8x16xf32>
    %81 = arith.subf %75, %80 : vector<8x16xf32>
    %82 = arith.mulf %81, %81 : vector<8x16xf32>
    %cst_40 = arith.constant dense<0.000000e+00> : vector<8xf32>
    %83 = vector.multi_reduction <add>, %82, %cst_40 [1] : vector<8x16xf32> to vector<8xf32>
    %84 = vector.shape_cast %83 : vector<8xf32> to vector<8x1xf32>
    %cst_41 = arith.constant 6.250000e-02 : f32
    %85 = vector.broadcast %cst_41 : f32 to vector<8x1xf32>
    %86 = arith.mulf %84, %85 : vector<8x1xf32>
    %cst_42 = arith.constant 9.99999974E-6 : f32
    %87 = vector.broadcast %cst_42 : f32 to vector<8x1xf32>
    %88 = arith.addf %86, %87 : vector<8x1xf32>
    %89 = math.rsqrt %88 : vector<8x1xf32>
    %90 = vector.broadcast %89 : vector<8x1xf32> to vector<8x16xf32>
    %91 = arith.mulf %81, %90 : vector<8x16xf32>
    %c0_43 = arith.constant 0 : index
    %c0_44 = arith.constant 0 : index
    %92 = vector.load %arg9[%c0_43, %c0_44] : memref<1x16xf32, #tpu.memory_space<vmem>>, vector<1x16xf32>
    %93 = vector.broadcast %92 : vector<1x16xf32> to vector<8x16xf32>
    %94 = arith.mulf %91, %93 : vector<8x16xf32>
    %c0_45 = arith.constant 0 : index
    %c0_46 = arith.constant 0 : index
    %95 = vector.load %arg10[%c0_45, %c0_46] : memref<1x16xf32, #tpu.memory_space<vmem>>, vector<1x16xf32>
    %96 = vector.broadcast %95 : vector<1x16xf32> to vector<8x16xf32>
    %97 = arith.addf %94, %96 : vector<8x16xf32>
    %c0_47 = arith.constant 0 : index
    %c0_48 = arith.constant 0 : index
    %c0_49 = arith.constant 0 : index
    %98 = vector.load %arg12[%c0_47, %c0_48, %c0_49] : memref<1x8x16xf32, #tpu.memory_space<vmem>>, vector<1x8x16xf32>
    %99 = vector.shape_cast %98 : vector<1x8x16xf32> to vector<8x16xf32>
    %100 = vector.shape_cast %97 : vector<8x16xf32> to vector<1x8x16xf32>
    tpu.vector_store %arg12[%c0_47, %c0_48, %c0_49], %100 {strides = array<i32>} : memref<1x8x16xf32, #tpu.memory_space<vmem>>, vector<1x8x16xf32>,
    return
  }
  func.func @transform_0(%arg0: i32, %arg1: i32) -> (i32, i32, i32) {
    %c0_i32 = arith.constant 0 : i32
    %c0_i32_0 = arith.constant 0 : i32
    return %arg0, %arg1, %c0_i32 : i32, i32, i32
  }
  func.func @transform_1(%arg0: i32, %arg1: i32) -> (i32, i32, i32, i32) {
    %c0_i32 = arith.constant 0 : i32
    %c0_i32_0 = arith.constant 0 : i32
    %c0_i32_1 = arith.constant 0 : i32
    return %arg0, %arg1, %c0_i32, %c0_i32_0 : i32, i32, i32, i32
  }
  func.func @transform_2(%arg0: i32, %arg1: i32) -> (i32, i32, i32) {
    %c0_i32 = arith.constant 0 : i32
    %c0_i32_0 = arith.constant 0 : i32
    return %arg0, %arg1, %c0_i32 : i32, i32, i32
  }
  func.func @transform_3(%arg0: i32, %arg1: i32) -> (i32, i32, i32) {
    %c0_i32 = arith.constant 0 : i32
    %c0_i32_0 = arith.constant 0 : i32
    %c0_i32_1 = arith.constant 0 : i32
    return %arg0, %c0_i32, %c0_i32_0 : i32, i32, i32
  }
  func.func @transform_4(%arg0: i32, %arg1: i32) -> (i32, i32) {
    %c0_i32 = arith.constant 0 : i32
    %c0_i32_0 = arith.constant 0 : i32
    %c0_i32_1 = arith.constant 0 : i32
    return %c0_i32, %c0_i32_0 : i32, i32
  }
  func.func @transform_5(%arg0: i32, %arg1: i32) -> (i32, i32) {
    %c0_i32 = arith.constant 0 : i32
    %c0_i32_0 = arith.constant 0 : i32
    %c0_i32_1 = arith.constant 0 : i32
    return %c0_i32, %c0_i32_0 : i32, i32
  }
  func.func @transform_6(%arg0: i32, %arg1: i32) -> (i32, i32) {
    %c0_i32 = arith.constant 0 : i32
    %c0_i32_0 = arith.constant 0 : i32
    %c0_i32_1 = arith.constant 0 : i32
    return %c0_i32, %c0_i32_0 : i32, i32
  }
  func.func @transform_7(%arg0: i32, %arg1: i32) -> (i32, i32) {
    %c0_i32 = arith.constant 0 : i32
    %c0_i32_0 = arith.constant 0 : i32
    %c0_i32_1 = arith.constant 0 : i32
    return %c0_i32, %c0_i32_0 : i32, i32
  }
  func.func @transform_8(%arg0: i32, %arg1: i32) -> (i32, i32) {
    %c0_i32 = arith.constant 0 : i32
    %c0_i32_0 = arith.constant 0 : i32
    %c0_i32_1 = arith.constant 0 : i32
    return %c0_i32, %c0_i32_0 : i32, i32
  }
  func.func @transform_9(%arg0: i32, %arg1: i32) -> (i32, i32) {
    %c0_i32 = arith.constant 0 : i32
    %c0_i32_0 = arith.constant 0 : i32
    %c0_i32_1 = arith.constant 0 : i32
    return %c0_i32, %c0_i32_0 : i32, i32
  }
  func.func @transform_10(%arg0: i32, %arg1: i32) -> (i32, i32, i32) {
    %c0_i32 = arith.constant 0 : i32
    %c0_i32_0 = arith.constant 0 : i32
    return %arg0, %arg1, %c0_i32 : i32, i32, i32
  }
  func.func @transform_11(%arg0: i32, %arg1: i32) -> (i32, i32, i32, i32) {
    %c0_i32 = arith.constant 0 : i32
    %c0_i32_0 = arith.constant 0 : i32
    %c0_i32_1 = arith.constant 0 : i32
    return %arg0, %arg1, %c0_i32, %c0_i32_0 : i32, i32, i32, i32
  }
}

</mosaic_0001>

<llo_original>
// kernel: tpu_custom_call.1
$region0: #{tpu_custom_call.1}
  #allocation0 [shape = 'u32[]', space=smem, size = 0x4, offset = 0x4, fixed_abs, tag = 'smem constant byte address 0x4 - core index']
  #allocation1 [shape = 'u32[144,128]{1,0:T(1,128)}', space=vmem, size = 0x12000, scoped, tag = 'internal scratch']
  %s0 = inlined_call_operand.vmem [shape: f32[2,8,16], index: 0, kind: input, shape index: {}]
  %s1 = inlined_call_operand.hbm [shape: f32[2,8,8,8], index: 1, kind: input, shape index: {}]
  %s2 = inlined_call_operand.vmem [shape: f32[2,8,3], index: 2, kind: input, shape index: {}]
  %s3 = inlined_call_operand.vmem [shape: f32[2,3,8], index: 3, kind: input, shape index: {}]
  %s4 = inlined_call_operand.vmem [shape: f32[1,8], index: 4, kind: input, shape index: {}]
  %s5 = inlined_call_operand.vmem [shape: f32[8,8], index: 5, kind: input, shape index: {}]
  %s6 = inlined_call_operand.vmem [shape: f32[1,8], index: 6, kind: input, shape index: {}]
  %s7 = inlined_call_operand.vmem [shape: f32[1,16], index: 7, kind: input, shape index: {}]
  %s8 = inlined_call_operand.vmem [shape: f32[1,16], index: 8, kind: input, shape index: {}]
  %s9 = inlined_call_operand.vmem [shape: f32[1,8], index: 9, kind: input, shape index: {}]
  %s10 = inlined_call_operand.hbm [shape: f32[2,8,16], index: 10, kind: output, shape index: {0}]
  %s11 = inlined_call_operand.hbm [shape: f32[2,8,8,8], index: 11, kind: output, shape index: {1}]
  %12 = xla_tuple %s10, %s11
  %s13 = sld [smem:[#allocation0]]
  $region85: #{tpu_custom_call.1} parent=0
    _
  %s15 = ssub.s32 1, %s13
  %s16 = scalar_select 0, %s15, %s13
  $region1: #{tpu_custom_call.1} parent=0
    #allocation2 [shape = 'u8[65536]{0}', space=vmem, size = 0x10000, scoped, tag = 'input window, operand 1']
    #allocation3 [shape = 's32[2]{0}', space=sflag, size = 0x8, scoped, tag = 'scoped memory for tpu_custom_call.1']
    #allocation4 [shape = 's32[2]{0}', space=sflag, size = 0x8, scoped, tag = 'scoped memory for tpu_custom_call.1']
    #allocation5 [shape = 'u8[8192]{0}', space=vmem, size = 0x2000, scoped, tag = 'output window, operand 0']
    #allocation6 [shape = 'u8[65536]{0}', space=vmem, size = 0x10000, scoped, tag = 'output window, operand 1']
    #allocation7 [shape = 's32[2]{0}', space=sflag, size = 0x8, scoped, tag = 'scoped memory for tpu_custom_call.1']
    %17 = vsyncpa [#allocation3], 0
    %s18 = scalar_lea.sflag [#allocation3], 1
    %19 = vsyncpa %s18, 0
    %20 = vsyncpa [#allocation4], 0
    %s21 = scalar_lea.sflag [#allocation4], 1
    %22 = vsyncpa %s21, 0
    %23 = vsyncpa [#allocation7], 0
    %s24 = scalar_lea.sflag [#allocation7], 1
    %25 = vsyncpa %s24, 0
    loop: start=0, step=1, limit=4
    $region2: #{tpu_custom_call.1} parent=1 // loop_pre_header
      _
    $region3: #{tpu_custom_call.1} parent=1 // loop_header
      %s27 = sphi 0, %s31
      %p28 = scmp.ge.s32.totalorder %s27, 4
      %s34 = sphi 0, %s46
      %s35 = sphi 0, %s42
      %s36 = sphi 0, %s34
      %s37 = sphi 0, %s35
      %s38 = sphi 0, %s36
      %s39 = sphi 0, %s37
      %s51 = sphi 0, %s53
      %s54 = sphi 0, %s51
      %s55 = sphi 0, %s54
      %s71 = sphi 0, %s55
      %s79 = sphi 0, %s81
      %s82 = sphi 0, %s79
      %s83 = sphi 0, %s82
      %s99 = sphi 0, %s83
      %s107 = sphi 0, %s109
      %s110 = sphi 0, %s107
      %s111 = sphi 0, %s110
      %s127 = sphi 0, %s111
      %s133 = sphi 0, %s135
      %s136 = sphi 0, %s133
      %s137 = sphi 0, %s136
      %s153 = sphi 0, %s137
      %s157 = sphi 0, %s157
      %s159 = sphi 0, %s157
      %s160 = sphi 0, %s159
      %s174 = sphi 0, %s160
      %s178 = sphi 0, %s178
      %s180 = sphi 0, %s178
      %s181 = sphi 0, %s180
      %s195 = sphi 0, %s181
      %s199 = sphi 0, %s199
      %s201 = sphi 0, %s199
      %s202 = sphi 0, %s201
      %s216 = sphi 0, %s202
      %s220 = sphi 0, %s220
      %s222 = sphi 0, %s220
      %s223 = sphi 0, %s222
      %s237 = sphi 0, %s223
      %s241 = sphi 0, %s241
      %s243 = sphi 0, %s241
      %s244 = sphi 0, %s243
      %s258 = sphi 0, %s244
      %s262 = sphi 0, %s262
      %s264 = sphi 0, %s262
      %s265 = sphi 0, %s264
      %s279 = sphi 0, %s265
      %s287 = sphi 0, %s289
      %s290 = sphi 0, %s287
      %s291 = sphi 0, %s290
      %s307 = sphi 0, %s291
      %s315 = sphi 0, %s317
      %s318 = sphi 0, %s315
      %s319 = sphi 0, %s318
      %s335 = sphi 0, %s319
    $region4: #{tpu_custom_call.1} parent=1 // loop_header_branch
      %30 = sbr.rel (%p28) target = $region8
    $region5: #{tpu_custom_call.1} parent=1 // loop_body
      %s32 = ssub.s32 %s27, 1
      %s33 = ssub.s32 %s27, 2
      %s40 = sadd.s32 1, %s35
      %p41 = scmp.ge.s32.totalorder %s40, 1
      %s42 = scalar_select %p41, 0, %s40
      %s43 = sadd.s32 1, %s34
      %s44 = scalar_select %p41, %s43, %s34
      %p45 = scmp.ge.s32.totalorder %s44, 2
      %s46 = scalar_select %p45, 0, %s44
      %s47 = ssub.s32 %s34, %s46
      %s48 = ssub.s32 %s35, %s42
      %s49 = sor.u32 %s47, %s48
      %p50 = scmp.eq.s32.totalorder %s49, 0
      %s52 = sadd.s32 %s51, 1
      %s53 = scalar_select %p50, %s51, %s52
      %p56 = pneg %p50
      %p57 = scmp.eq.s32.totalorder %s27, 1
      %p58 = por %p56, %p57
      %p59 = scmp.ne.s32.totalorder %s51, %s54
      %p60 = scmp.eq.s32.totalorder %s27, 0
      %p61 = por %p59, %p60
      %p62 = scmp.ne.s32.totalorder %s51, %s54
      %p63 = scmp.eq.s32.totalorder %s32, 1
      %p64 = por %p62, %p63
      %p65 = scmp.ne.s32.totalorder %s54, %s55
      %p66 = scmp.eq.s32.totalorder %s32, 0
      %p67 = por %p65, %p66
      %p68 = scmp.ne.s32.totalorder %s54, %s55
      %p69 = scmp.eq.s32.totalorder %s33, 1
      %p70 = por %p68, %p69
      %p72 = scmp.ne.s32.totalorder %s55, %s71
      %p73 = scmp.eq.s32.totalorder %s33, 0
      %p74 = por %p72, %p73
      %s75 = ssub.s32 %s34, %s46
      %s76 = ssub.s32 %s35, %s42
      %s77 = sor.u32 %s75, %s76
      %p78 = scmp.eq.s32.totalorder %s77, 0
      %s80 = sadd.s32 %s79, 1
      %s81 = scalar_select %p78, %s79, %s80
      %p84 = pneg %p78
      %p85 = scmp.eq.s32.totalorder %s27, 1
      %p86 = por %p84, %p85
      %p87 = scmp.ne.s32.totalorder %s79, %s82
      %p88 = scmp.eq.s32.totalorder %s27, 0
      %p89 = por %p87, %p88
      %p90 = scmp.ne.s32.totalorder %s79, %s82
      %p91 = scmp.eq.s32.totalorder %s32, 1
      %p92 = por %p90, %p91
      %p93 = scmp.ne.s32.totalorder %s82, %s83
      %p94 = scmp.eq.s32.totalorder %s32, 0
      %p95 = por %p93, %p94
      %p96 = scmp.ne.s32.totalorder %s82, %s83
      %p97 = scmp.eq.s32.totalorder %s33, 1
      %p98 = por %p96, %p97
      %p100 = scmp.ne.s32.totalorder %s83, %s99
      %p101 = scmp.eq.s32.totalorder %s33, 0
      %p102 = por %p100, %p101
      %s103 = ssub.s32 %s34, %s46
      %s104 = ssub.s32 %s35, %s42
      %s105 = sor.u32 %s103, %s104
      %p106 = scmp.eq.s32.totalorder %s105, 0
      %s108 = sadd.s32 %s107, 1
      %s109 = scalar_select %p106, %s107, %s108
      %p112 = pneg %p106
      %p113 = scmp.eq.s32.totalorder %s27, 1
      %p114 = por %p112, %p113
      %p115 = scmp.ne.s32.totalorder %s107, %s110
      %p116 = scmp.eq.s32.totalorder %s27, 0
      %p117 = por %p115, %p116
      %p118 = scmp.ne.s32.totalorder %s107, %s110
      %p119 = scmp.eq.s32.totalorder %s32, 1
      %p120 = por %p118, %p119
      %p121 = scmp.ne.s32.totalorder %s110, %s111
      %p122 = scmp.eq.s32.totalorder %s32, 0
      %p123 = por %p121, %p122
      %p124 = scmp.ne.s32.totalorder %s110, %s111
      %p125 = scmp.eq.s32.totalorder %s33, 1
      %p126 = por %p124, %p125
      %p128 = scmp.ne.s32.totalorder %s111, %s127
      %p129 = scmp.eq.s32.totalorder %s33, 0
      %p130 = por %p128, %p129
      %s131 = ssub.s32 %s34, %s46
      %p132 = scmp.eq.s32.totalorder %s131, 0
      %s134 = sadd.s32 %s133, 1
      %s135 = scalar_select %p132, %s133, %s134
      %p138 = pneg %p132
      %p139 = scmp.eq.s32.totalorder %s27, 1
      %p140 = por %p138, %p139
      %p141 = scmp.ne.s32.totalorder %s133, %s136
      %p142 = scmp.eq.s32.totalorder %s27, 0
      %p143 = por %p141, %p142
      %p144 = scmp.ne.s32.totalorder %s133, %s136
      %p145 = scmp.eq.s32.totalorder %s32, 1
      %p146 = por %p144, %p145
      %p147 = scmp.ne.s32.totalorder %s136, %s137
      %p148 = scmp.eq.s32.totalorder %s32, 0
      %p149 = por %p147, %p148
      %p150 = scmp.ne.s32.totalorder %s136, %s137
      %p151 = scmp.eq.s32.totalorder %s33, 1
      %p152 = por %p150, %p151
      %p154 = scmp.ne.s32.totalorder %s137, %s153
      %p155 = scmp.eq.s32.totalorder %s33, 0
      %p156 = por %p154, %p155
      %s158 = sadd.s32 %s157, 1
      %p161 = scmp.eq.s32.totalorder %s27, 1
      %p162 = scmp.ne.s32.totalorder %s157, %s159
      %p163 = scmp.eq.s32.totalorder %s27, 0
      %p164 = por %p162, %p163
      %p165 = scmp.ne.s32.totalorder %s157, %s159
      %p166 = scmp.eq.s32.totalorder %s32, 1
      %p167 = por %p165, %p166
      %p168 = scmp.ne.s32.totalorder %s159, %s160
      %p169 = scmp.eq.s32.totalorder %s32, 0
      %p170 = por %p168, %p169
      %p171 = scmp.ne.s32.totalorder %s159, %s160
      %p172 = scmp.eq.s32.totalorder %s33, 1
      %p173 = por %p171, %p172
      %p175 = scmp.ne.s32.totalorder %s160, %s174
      %p176 = scmp.eq.s32.totalorder %s33, 0
      %p177 = por %p175, %p176
      %s179 = sadd.s32 %s178, 1
      %p182 = scmp.eq.s32.totalorder %s27, 1
      %p183 = scmp.ne.s32.totalorder %s178, %s180
      %p184 = scmp.eq.s32.totalorder %s27, 0
      %p185 = por %p183, %p184
      %p186 = scmp.ne.s32.totalorder %s178, %s180
      %p187 = scmp.eq.s32.totalorder %s32, 1
      %p188 = por %p186, %p187
      %p189 = scmp.ne.s32.totalorder %s180, %s181
      %p190 = scmp.eq.s32.totalorder %s32, 0
      %p191 = por %p189, %p190
      %p192 = scmp.ne.s32.totalorder %s180, %s181
      %p193 = scmp.eq.s32.totalorder %s33, 1
      %p194 = por %p192, %p193
      %p196 = scmp.ne.s32.totalorder %s181, %s195
      %p197 = scmp.eq.s32.totalorder %s33, 0
      %p198 = por %p196, %p197
      %s200 = sadd.s32 %s199, 1
      %p203 = scmp.eq.s32.totalorder %s27, 1
      %p204 = scmp.ne.s32.totalorder %s199, %s201
      %p205 = scmp.eq.s32.totalorder %s27, 0
      %p206 = por %p204, %p205
      %p207 = scmp.ne.s32.totalorder %s199, %s201
      %p208 = scmp.eq.s32.totalorder %s32, 1
      %p209 = por %p207, %p208
      %p210 = scmp.ne.s32.totalorder %s201, %s202
      %p211 = scmp.eq.s32.totalorder %s32, 0
      %p212 = por %p210, %p211
      %p213 = scmp.ne.s32.totalorder %s201, %s202
      %p214 = scmp.eq.s32.totalorder %s33, 1
      %p215 = por %p213, %p214
      %p217 = scmp.ne.s32.totalorder %s202, %s216
      %p218 = scmp.eq.s32.totalorder %s33, 0
      %p219 = por %p217, %p218
      %s221 = sadd.s32 %s220, 1
      %p224 = scmp.eq.s32.totalorder %s27, 1
      %p225 = scmp.ne.s32.totalorder %s220, %s222
      %p226 = scmp.eq.s32.totalorder %s27, 0
      %p227 = por %p225, %p226
      %p228 = scmp.ne.s32.totalorder %s220, %s222
      %p229 = scmp.eq.s32.totalorder %s32, 1
      %p230 = por %p228, %p229
      %p231 = scmp.ne.s32.totalorder %s222, %s223
      %p232 = scmp.eq.s32.totalorder %s32, 0
      %p233 = por %p231, %p232
      %p234 = scmp.ne.s32.totalorder %s222, %s223
      %p235 = scmp.eq.s32.totalorder %s33, 1
      %p236 = por %p234, %p235
      %p238 = scmp.ne.s32.totalorder %s223, %s237
      %p239 = scmp.eq.s32.totalorder %s33, 0
      %p240 = por %p238, %p239
      %s242 = sadd.s32 %s241, 1
      %p245 = scmp.eq.s32.totalorder %s27, 1
      %p246 = scmp.ne.s32.totalorder %s241, %s243
      %p247 = scmp.eq.s32.totalorder %s27, 0
      %p248 = por %p246, %p247
      %p249 = scmp.ne.s32.totalorder %s241, %s243
      %p250 = scmp.eq.s32.totalorder %s32, 1
      %p251 = por %p249, %p250
      %p252 = scmp.ne.s32.totalorder %s243, %s244
      %p253 = scmp.eq.s32.totalorder %s32, 0
      %p254 = por %p252, %p253
      %p255 = scmp.ne.s32.totalorder %s243, %s244
      %p256 = scmp.eq.s32.totalorder %s33, 1
      %p257 = por %p255, %p256
      %p259 = scmp.ne.s32.totalorder %s244, %s258
      %p260 = scmp.eq.s32.totalorder %s33, 0
      %p261 = por %p259, %p260
      %s263 = sadd.s32 %s262, 1
      %p266 = scmp.eq.s32.totalorder %s27, 1
      %p267 = scmp.ne.s32.totalorder %s262, %s264
      %p268 = scmp.eq.s32.totalorder %s27, 0
      %p269 = por %p267, %p268
      %p270 = scmp.ne.s32.totalorder %s262, %s264
      %p271 = scmp.eq.s32.totalorder %s32, 1
      %p272 = por %p270, %p271
      %p273 = scmp.ne.s32.totalorder %s264, %s265
      %p274 = scmp.eq.s32.totalorder %s32, 0
      %p275 = por %p273, %p274
      %p276 = scmp.ne.s32.totalorder %s264, %s265
      %p277 = scmp.eq.s32.totalorder %s33, 1
      %p278 = por %p276, %p277
      %p280 = scmp.ne.s32.totalorder %s265, %s279
      %p281 = scmp.eq.s32.totalorder %s33, 0
      %p282 = por %p280, %p281
      %s283 = ssub.s32 %s34, %s46
      %s284 = ssub.s32 %s35, %s42
      %s285 = sor.u32 %s283, %s284
      %p286 = scmp.eq.s32.totalorder %s285, 0
      %s288 = sadd.s32 %s287, 1
      %s289 = scalar_select %p286, %s287, %s288
      %p292 = pneg %p286
      %p293 = scmp.eq.s32.totalorder %s27, 1
      %p294 = por %p292, %p293
      %p295 = scmp.ne.s32.totalorder %s287, %s290
      %p296 = scmp.eq.s32.totalorder %s27, 0
      %p297 = por %p295, %p296
      %p298 = scmp.ne.s32.totalorder %s287, %s290
      %p299 = scmp.eq.s32.totalorder %s32, 1
      %p300 = por %p298, %p299
      %p301 = scmp.ne.s32.totalorder %s290, %s291
      %p302 = scmp.eq.s32.totalorder %s32, 0
      %p303 = por %p301, %p302
      %p304 = scmp.ne.s32.totalorder %s290, %s291
      %p305 = scmp.eq.s32.totalorder %s33, 1
      %p306 = por %p304, %p305
      %p308 = scmp.ne.s32.totalorder %s291, %s307
      %p309 = scmp.eq.s32.totalorder %s33, 0
      %p310 = por %p308, %p309
      %s311 = ssub.s32 %s34, %s46
      %s312 = ssub.s32 %s35, %s42
      %s313 = sor.u32 %s311, %s312
      %p314 = scmp.eq.s32.totalorder %s313, 0
      %s316 = sadd.s32 %s315, 1
      %s317 = scalar_select %p314, %s315, %s316
      %p320 = pneg %p314
      %p321 = scmp.eq.s32.totalorder %s27, 1
      %p322 = por %p320, %p321
      %p323 = scmp.ne.s32.totalorder %s315, %s318
      %p324 = scmp.eq.s32.totalorder %s27, 0
      %p325 = por %p323, %p324
      %p326 = scmp.ne.s32.totalorder %s315, %s318
      %p327 = scmp.eq.s32.totalorder %s32, 1
      %p328 = por %p326, %p327
      %p329 = scmp.ne.s32.totalorder %s318, %s319
      %p330 = scmp.eq.s32.totalorder %s32, 0
      %p331 = por %p329, %p330
      %p332 = scmp.ne.s32.totalorder %s318, %s319
      %p333 = scmp.eq.s32.totalorder %s33, 1
      %p334 = por %p332, %p333
      %p336 = scmp.ne.s32.totalorder %s319, %s335
      %p337 = scmp.eq.s32.totalorder %s33, 0
      %p338 = por %p336, %p337
      %p339 = scmp.le.s32.totalorder 1, %s27
      %p340 = scmp.lt.s32.totalorder %s27, 3
      %p341 = pnand %p339, %p340
      %p342 = pneg %p341
      // Predicated region
      $region9: #{tpu_custom_call.1} parent=5 // pred_check
        _
      $region10: #{tpu_custom_call.1} parent=5 // pred_check_branch
        %344 = sbr.rel (%p341) target = $region12
      $region11: #{tpu_custom_call.1} parent=5 // pred_region
        %s345 = ssub.s32 %s27, 1
        // Predicated region
        $region13: #{tpu_custom_call.1} parent=11 // pred_check
          %p346 = pneg %p170
        $region14: #{tpu_custom_call.1} parent=11 // pred_check_branch
          %348 = sbr.rel (%p346) target = $region16
        $region15: #{tpu_custom_call.1} parent=11 // pred_region
          _
        $region16: #{tpu_custom_call.1} parent=11 // pred_fallthru
          _
        // Predicated region
        $region17: #{tpu_custom_call.1} parent=11 // pred_check
          %p349 = pneg %p191
        $region18: #{tpu_custom_call.1} parent=11 // pred_check_branch
          %351 = sbr.rel (%p349) target = $region20
        $region19: #{tpu_custom_call.1} parent=11 // pred_region
          _
        $region20: #{tpu_custom_call.1} parent=11 // pred_fallthru
          _
        // Predicated region
        $region21: #{tpu_custom_call.1} parent=11 // pred_check
          %p352 = pneg %p212
        $region22: #{tpu_custom_call.1} parent=11 // pred_check_branch
          %354 = sbr.rel (%p352) target = $region24
        $region23: #{tpu_custom_call.1} parent=11 // pred_region
          _
        $region24: #{tpu_custom_call.1} parent=11 // pred_fallthru
          _
        // Predicated region
        $region25: #{tpu_custom_call.1} parent=11 // pred_check
          %p355 = pneg %p233
        $region26: #{tpu_custom_call.1} parent=11 // pred_check_branch
          %357 = sbr.rel (%p355) target = $region28
        $region27: #{tpu_custom_call.1} parent=11 // pred_region
          _
        $region28: #{tpu_custom_call.1} parent=11 // pred_fallthru
          _
        // Predicated region
        $region29: #{tpu_custom_call.1} parent=11 // pred_check
          %p358 = pneg %p254
        $region30: #{tpu_custom_call.1} parent=11 // pred_check_branch
          %360 = sbr.rel (%p358) target = $region32
        $region31: #{tpu_custom_call.1} parent=11 // pred_region
          _
        $region32: #{tpu_custom_call.1} parent=11 // pred_fallthru
          _
        // Predicated region
        $region33: #{tpu_custom_call.1} parent=11 // pred_check
          %p361 = pneg %p275
        $region34: #{tpu_custom_call.1} parent=11 // pred_check_branch
          %363 = sbr.rel (%p361) target = $region36
        $region35: #{tpu_custom_call.1} parent=11 // pred_region
          _
        $region36: #{tpu_custom_call.1} parent=11 // pred_fallthru
          _
      $region12: #{tpu_custom_call.1} parent=5 // pred_fallthru
        _
      %p364 = scmp.lt.s32.totalorder %s27, 2
      // Predicated region
      $region37: #{tpu_custom_call.1} parent=5 // pred_check
        %p365 = pneg %p364
      $region38: #{tpu_custom_call.1} parent=5 // pred_check_branch
        %367 = sbr.rel (%p365) target = $region40
      $region39: #{tpu_custom_call.1} parent=5 // pred_region
        // Predicated region
        $region41: #{tpu_custom_call.1} parent=39 // pred_check
          %p368 = pneg %p61
        $region42: #{tpu_custom_call.1} parent=39 // pred_check_branch
          %370 = sbr.rel (%p368) target = $region44
        $region43: #{tpu_custom_call.1} parent=39 // pred_region
          %p371 = scmp.lt.s32.totalorder %s34, 1
          %s372 = scalar_select %p371, %s34, 1
          %p373 = scmp.lt.s32.totalorder %s35, 0
          %s374 = scalar_select %p373, %s35, 0
          %s375 = sadd.s32 %s374, %s372
          %s376 = smul.addr %s375, 8
          %s377 = scalar_lea.vmem %s0, %s376
        $region44: #{tpu_custom_call.1} parent=39 // pred_fallthru
          _
        // Predicated region
        $region45: #{tpu_custom_call.1} parent=39 // pred_check
          %p378 = pneg %p89
        $region46: #{tpu_custom_call.1} parent=39 // pred_check_branch
          %380 = sbr.rel (%p378) target = $region48
        $region47: #{tpu_custom_call.1} parent=39 // pred_region
          %s381 = sand.u32 %s79, 1
          %s382 = scalar_lea.sflag [#allocation3], %s381
          %s383 = sand.u32 %s79, 1
          %s384 = smul.addr %s383, 64
          %s385 = scalar_lea.vmem [#allocation2], %s384
          %s386 = smul.u32 8, %s35
          %s388 = ssub.s32 1024, 1024
          %389 = vsyncadd %s382, %s388
          %s390 = smul.addr %s34, 8
          %s391 = sadd.s32 %s386, %s390
          %s392 = smul.addr %s391, 128
          %s393 = scalar_lea.hbm %s1, %s392
          %s394 = sshll.u32 %s385, 4
          %s395 = int_to_ptr.vmem [resolvable:$true] %s394
          %400 = dma.hbm_to_vmem [thread:$0]  %s393, 1024, %s395, %s382, 128, 128, 8
        $region48: #{tpu_custom_call.1} parent=39 // pred_fallthru
          _
        // Predicated region
        $region49: #{tpu_custom_call.1} parent=39 // pred_check
          %p401 = pneg %p117
        $region50: #{tpu_custom_call.1} parent=39 // pred_check_branch
          %403 = sbr.rel (%p401) target = $region52
        $region51: #{tpu_custom_call.1} parent=39 // pred_region
          %p404 = scmp.lt.s32.totalorder %s34, 1
          %s405 = scalar_select %p404, %s34, 1
          %p406 = scmp.lt.s32.totalorder %s35, 0
          %s407 = scalar_select %p406, %s35, 0
          %s408 = sadd.s32 %s407, %s405
          %s409 = smul.addr %s408, 8
          %s410 = scalar_lea.vmem %s2, %s409
        $region52: #{tpu_custom_call.1} parent=39 // pred_fallthru
          _
        // Predicated region
        $region53: #{tpu_custom_call.1} parent=39 // pred_check
          %p411 = pneg %p143
        $region54: #{tpu_custom_call.1} parent=39 // pred_check_branch
          %413 = sbr.rel (%p411) target = $region56
        $region55: #{tpu_custom_call.1} parent=39 // pred_region
          %p414 = scmp.lt.s32.totalorder %s34, 1
          %s415 = scalar_select %p414, %s34, 1
          %s416 = smul.addr %s415, 4
          %s417 = scalar_lea.vmem %s3, %s416
        $region56: #{tpu_custom_call.1} parent=39 // pred_fallthru
          _
      $region40: #{tpu_custom_call.1} parent=5 // pred_fallthru
        _
      %p418 = scmp.le.s32.totalorder 1, %s27
      %p419 = scmp.lt.s32.totalorder %s27, 3
      %p420 = pnand %p418, %p419
      %p421 = pneg %p420
      // Predicated region
      $region57: #{tpu_custom_call.1} parent=5 // pred_check
        _
      $region58: #{tpu_custom_call.1} parent=5 // pred_check_branch
        %423 = sbr.rel (%p420) target = $region60
      $region59: #{tpu_custom_call.1} parent=5 // pred_region
        %s424 = ssub.s32 %s27, 1
        %s425 = sand.u32 %s82, 1
        %s426 = scalar_lea.sflag [#allocation3], %s425
        %s427 = sand.u32 %s82, 1
        %s428 = smul.addr %s427, 64
        %s429 = scalar_lea.vmem [#allocation2], %s428
        // Predicated region
        $region61: #{tpu_custom_call.1} parent=59 // pred_check
          %p430 = pneg %p95
        $region62: #{tpu_custom_call.1} parent=59 // pred_check_branch
          %432 = sbr.rel (%p430) target = $region64
        $region63: #{tpu_custom_call.1} parent=59 // pred_region
          %433 = dma.done %s426, 1024
        $region64: #{tpu_custom_call.1} parent=59 // pred_fallthru
          _
        %p434 = scmp.lt.s32.totalorder %s36, 1
        %s435 = scalar_select %p434, %s36, 1
        %p436 = scmp.lt.s32.totalorder %s37, 0
        %s437 = scalar_select %p436, %s37, 0
        %s438 = sadd.s32 %s437, %s435
        %s439 = smul.addr %s438, 8
        %s440 = scalar_lea.vmem %s0, %s439
        %p441 = pneg %p67
        %p442 = pneg %p64
        %s443 = sand.u32 %s82, 1
        %s444 = scalar_lea.sflag [#allocation3], %s443
        %s445 = sand.u32 %s82, 1
        %s446 = smul.addr %s445, 64
        %s447 = scalar_lea.vmem [#allocation2], %s446
        %p448 = pneg %p95
        %p449 = pneg %p92
        %p450 = scmp.lt.s32.totalorder %s36, 1
        %s451 = scalar_select %p450, %s36, 1
        %p452 = scmp.lt.s32.totalorder %s37, 0
        %s453 = scalar_select %p452, %s37, 0
        %s454 = sadd.s32 %s453, %s451
        %s455 = smul.addr %s454, 8
        %s456 = scalar_lea.vmem %s2, %s455
        %p457 = pneg %p123
        %p458 = pneg %p120
        %p459 = scmp.lt.s32.totalorder %s36, 1
        %s460 = scalar_select %p459, %s36, 1
        %s461 = smul.addr %s460, 4
        %s462 = scalar_lea.vmem %s3, %s461
        %p463 = pneg %p149
        %p464 = pneg %p146
        %p465 = pneg %p170
        %p466 = pneg %p167
        %p467 = pneg %p191
        %p468 = pneg %p188
        %p469 = pneg %p212
        %p470 = pneg %p209
        %p471 = pneg %p233
        %p472 = pneg %p230
        %p473 = pneg %p254
        %p474 = pneg %p251
        %p475 = pneg %p275
        %p476 = pneg %p272
        %p477 = pneg %p303
        %p478 = pneg %p300
        %s479 = sand.u32 %s290, 1
        %s480 = scalar_lea.sflag [#allocation4], %s479
        %s481 = sand.u32 %s290, 1
        %s482 = smul.addr %s481, 8
        %s483 = scalar_lea.vmem [#allocation5], %s482
        %p484 = pneg %p331
        %p485 = pneg %p328
        %s486 = sand.u32 %s318, 1
        %s487 = scalar_lea.sflag [#allocation7], %s486
        %s488 = sand.u32 %s318, 1
        %s489 = smul.addr %s488, 64
        %s490 = scalar_lea.vmem [#allocation6], %s489
        %p491 = scmp.lt.s32.totalorder %s36, 1
        %s492 = scalar_select %p491, %s36, 1
        %p493 = scmp.lt.s32.totalorder %s37, 0
        %s494 = scalar_select %p493, %s37, 0
        %s495 = sadd.s32 %s494, %s492
        %s496 = smul.addr %s495, 8
        %s497 = scalar_lea.vmem %s0, %s496
        %s498 = smul.u32 8, %s37
        %p499 = scmp.lt.s32.totalorder %s36, 1
        %s500 = scalar_select %p499, %s36, 1
        %p501 = scmp.lt.s32.totalorder %s37, 0
        %s502 = scalar_select %p501, %s37, 0
        %s503 = sadd.s32 %s502, %s500
        %s504 = smul.addr %s503, 8
        %s505 = scalar_lea.vmem %s2, %s504
        %p506 = scmp.lt.s32.totalorder %s36, 1
        %s507 = scalar_select %p506, %s36, 1
        %s508 = smul.addr %s507, 4
        %s509 = scalar_lea.vmem %s3, %s508
        %s510 = smul.u32 8, %s37
        %v511 = vld [vmem:[%s505] sm:$0xff]
        %v512 = vld [vmem:[%s509] sm:$0x7]
        %514 = vset.pattern.permute.xlu0 0
        %515 = vperm.xlu0 %514, %v511
        %v516 = vpop.permute.xlu0 %515
        %v518 = vlaneseq
        %v519 = vshrl.u32 %v518, 7
        %v520 = vsub.s32 0, %v519
        %v521 = vrot.slane %v512, %v520
        %v522 = vsub.f32 %v516, %v521
        %v523 = vmul.f32 %v522, %v522
        %v524 = vadd.f32 %v523, 0.0
        %525 = vset.pattern.permute.xlu0 1
        %526 = vperm.xlu0 %525, %v511
        %v527 = vpop.permute.xlu0 %526
        %v529 = vlaneseq
        %v530 = vshrl.u32 %v529, 7
        %v531 = vsub.s32 1, %v530
        %v532 = vrot.slane %v512, %v531
        %v533 = vsub.f32 %v527, %v532
        %v534 = vmul.f32 %v533, %v533
        %v535 = vadd.f32 %v524, %v534
        %536 = vset.pattern.permute.xlu0 2
        %537 = vperm.xlu0 %536, %v511
        %v538 = vpop.permute.xlu0 %537
        %v540 = vlaneseq
        %v541 = vshrl.u32 %v540, 7
        %v542 = vsub.s32 2, %v541
        %v543 = vrot.slane %v512, %v542
        %v544 = vsub.f32 %v538, %v543
        %v545 = vmul.f32 %v544, %v544
        %v546 = vadd.f32 %v535, %v545
        %v547 = vld [vmem:[%s4] sm:$0x1]
        %v548 = vlaneseq
        %v549 = vshrl.u32 %v548, 7
        %v550 = vsub.s32 0, %v549
        %v551 = vrot.slane %v546, %v550
        %553 = vbcast.lane.b32.xlu0 %v551, 256
        %v554 = vpop.permute.xlu0 %553
        %v555 = vlaneseq
        %v556 = vshrl.u32 %v555, 7
        %v557 = vsub.s32 1, %v556
        %v558 = vrot.slane %v546, %v557
        %560 = vbcast.lane.b32.xlu0 %v558, 256
        %v561 = vpop.permute.xlu0 %560
        %v562 = vlaneseq
        %v563 = vshrl.u32 %v562, 7
        %v564 = vsub.s32 2, %v563
        %v565 = vrot.slane %v546, %v564
        %567 = vbcast.lane.b32.xlu0 %v565, 256
        %v568 = vpop.permute.xlu0 %567
        %v569 = vlaneseq
        %v570 = vshrl.u32 %v569, 7
        %v571 = vsub.s32 3, %v570
        %v572 = vrot.slane %v546, %v571
        %574 = vbcast.lane.b32.xlu0 %v572, 256
        %v575 = vpop.permute.xlu0 %574
        %v576 = vlaneseq
        %v577 = vshrl.u32 %v576, 7
        %v578 = vsub.s32 4, %v577
        %v579 = vrot.slane %v546, %v578
        %581 = vbcast.lane.b32.xlu0 %v579, 256
        %v582 = vpop.permute.xlu0 %581
        %v583 = vlaneseq
        %v584 = vshrl.u32 %v583, 7
        %v585 = vsub.s32 5, %v584
        %v586 = vrot.slane %v546, %v585
        %588 = vbcast.lane.b32.xlu0 %v586, 256
        %v589 = vpop.permute.xlu0 %588
        %v590 = vlaneseq
        %v591 = vshrl.u32 %v590, 7
        %v592 = vsub.s32 6, %v591
        %v593 = vrot.slane %v546, %v592
        %595 = vbcast.lane.b32.xlu0 %v593, 256
        %v596 = vpop.permute.xlu0 %595
        %v597 = vlaneseq
        %v598 = vshrl.u32 %v597, 7
        %v599 = vsub.s32 7, %v598
        %v600 = vrot.slane %v546, %v599
        %602 = vbcast.lane.b32.xlu0 %v600, 256
        %v603 = vpop.permute.xlu0 %602
        %v605 = vlaneseq
        %v606 = vshrl.u32 %v605, 7
        %v607 = vsub.s32 0, %v606
        %v608 = vrot.slane %v547, %v607
        %vm610 = vcmp.gt.f32.partialorder %v554, %v608
        %vm611 = vcmp.gt.f32.partialorder %v561, %v608
        %vm612 = vcmp.gt.f32.partialorder %v568, %v608
        %vm613 = vcmp.gt.f32.partialorder %v575, %v608
        %vm614 = vcmp.gt.f32.partialorder %v582, %v608
        %vm615 = vcmp.gt.f32.partialorder %v589, %v608
        %vm616 = vcmp.gt.f32.partialorder %v596, %v608
        %vm617 = vcmp.gt.f32.partialorder %v603, %v608
        %v618 = vsel %vm610, 1, 0
        %v619 = vsel %vm611, 1, 0
        %v620 = vsel %vm612, 1, 0
        %v621 = vsel %vm613, 1, 0
        %v622 = vsel %vm614, 1, 0
        %v623 = vsel %vm615, 1, 0
        %v624 = vsel %vm616, 1, 0
        %v625 = vsel %vm617, 1, 0
        %v626 = vcvt.s32.f32 %v618
        %v627 = vcvt.s32.f32 %v619
        %v628 = vcvt.s32.f32 %v620
        %v629 = vcvt.s32.f32 %v621
        %v630 = vcvt.s32.f32 %v622
        %v631 = vcvt.s32.f32 %v623
        %v632 = vcvt.s32.f32 %v624
        %v633 = vcvt.s32.f32 %v625
        %v634 = vld [vmem:[%s5] sm:$0xff]
        %vm635 = vcmask 64512
        %v637 = vsel %vm635, %v626, 0
        %v640 = vsel %vm635, %v627, 0
        %v643 = vsel %vm635, %v628, 0
        %v646 = vsel %vm635, %v629, 0
        %v649 = vsel %vm635, %v630, 0
        %v652 = vsel %vm635, %v631, 0
        %v655 = vsel %vm635, %v632, 0
        %v658 = vsel %vm635, %v633, 0
        %660 = vmatprep.subr.mxu0 0.0
        %661 = vmatpush1.msra.mxu0 %v634
        %662 = vmatprep.subr.mxu0 0.0
        %663 = vmatpush1.msra.mxu0 0.0
        %664 = vmatprep.subr.mxu0 0.0
        %665 = vmatpush1.msra.mxu0 0.0
        %666 = vmatprep.subr.mxu0 0.0
        %667 = vmatpush1.msra.mxu0 0.0
        %668 = vmatprep.subr.mxu0 0.0
        %669 = vmatpush1.msra.mxu0 0.0
        %670 = vmatprep.subr.mxu0 0.0
        %671 = vmatpush1.msra.mxu0 0.0
        %672 = vmatprep.subr.mxu0 0.0
        %673 = vmatpush1.msra.mxu0 0.0
        %674 = vmatprep.subr.mxu0 0.0
        %675 = vmatpush1.msra.mxu0 0.0
        %676 = vmatprep.subr.mxu0 0.0
        %677 = vmatpush1.msra.mxu0 0.0
        %678 = vmatprep.subr.mxu0 0.0
        %679 = vmatpush1.msra.mxu0 0.0
        %680 = vmatprep.subr.mxu0 0.0
        %681 = vmatpush1.msra.mxu0 0.0
        %682 = vmatprep.subr.mxu0 0.0
        %683 = vmatpush1.msra.mxu0 0.0
        %684 = vmatprep.subr.mxu0 0.0
        %685 = vmatpush1.msra.mxu0 0.0
        %686 = vmatprep.subr.mxu0 0.0
        %687 = vmatpush1.msra.mxu0 0.0
        %688 = vmatprep.subr.mxu0 0.0
        %689 = vmatpush1.msra.mxu0 0.0
        %690 = vmatprep.subr.mxu0 0.0
        %691 = vmatpush1.msra.mxu0 0.0
        %692 = vmatprep.subr.mxu0 0.0
        %693 = vmatpush1.msra.mxu0 0.0
        %694 = vmatprep.subr.mxu0 0.0
        %695 = vmatpush1.msra.mxu0 0.0
        %696 = vmatprep.subr.mxu0 0.0
        %697 = vmatpush1.msra.mxu0 0.0
        %698 = vmatprep.subr.mxu0 0.0
        %699 = vmatpush1.msra.mxu0 0.0
        %700 = vmatprep.subr.mxu0 0.0
        %701 = vmatpush1.msra.mxu0 0.0
        %702 = vmatprep.subr.mxu0 0.0
        %703 = vmatpush1.msra.mxu0 0.0
        %704 = vmatprep.subr.mxu0 0.0
        %705 = vmatpush1.msra.mxu0 0.0
        %706 = vmatprep.subr.mxu0 0.0
        %707 = vmatpush1.msra.mxu0 0.0
        %708 = vmatprep.subr.mxu0 0.0
        %709 = vmatpush1.msra.mxu0 0.0
        %710 = vmatprep.subr.mxu0 0.0
        %711 = vmatpush1.msra.mxu0 0.0
        %712 = vmatprep.subr.mxu0 0.0
        %713 = vmatpush1.msra.mxu0 0.0
        %714 = vmatprep.subr.mxu0 0.0
        %715 = vmatpush1.msra.mxu0 0.0
        %716 = vmatprep.subr.mxu0 0.0
        %717 = vmatpush1.msra.mxu0 0.0
        %718 = vmatprep.subr.mxu0 0.0
        %719 = vmatpush1.msra.mxu0 0.0
        %720 = vmatprep.subr.mxu0 0.0
        %721 = vmatpush1.msra.mxu0 0.0
        %722 = vmatprep.subr.mxu0 0.0
        %723 = vmatpush1.msra.mxu0 0.0
        %724 = vmatprep.mubr.f32.mxu0 0.0
        %725 = vmatmul.mubr.f32.gmra.mrb[0].mxu0 %v637
        %v726 = vpop.f32.mrb[0].mxu0
        %v727 = vadd.f32 0.0, %v726
        %v728 = vpop.f32.mrb[0].mxu0
        %729 = vmatprep.mubr.f32.mxu0 0.0
        %730 = vmatmul.mubr.f32.gmra.mrb[0].mxu0 %v640
        %v731 = vpop.f32.mrb[0].mxu0
        %v732 = vadd.f32 0.0, %v731
        %v733 = vpop.f32.mrb[0].mxu0
        %734 = vmatprep.mubr.f32.mxu0 0.0
        %735 = vmatmul.mubr.f32.gmra.mrb[0].mxu0 %v643
        %v736 = vpop.f32.mrb[0].mxu0
        %v737 = vadd.f32 0.0, %v736
        %v738 = vpop.f32.mrb[0].mxu0
        %739 = vmatprep.mubr.f32.mxu0 0.0
        %740 = vmatmul.mubr.f32.gmra.mrb[0].mxu0 %v646
        %v741 = vpop.f32.mrb[0].mxu0
        %v742 = vadd.f32 0.0, %v741
        %v743 = vpop.f32.mrb[0].mxu0
        %744 = vmatprep.mubr.f32.mxu0 0.0
        %745 = vmatmul.mubr.f32.gmra.mrb[0].mxu0 %v649
        %v746 = vpop.f32.mrb[0].mxu0
        %v747 = vadd.f32 0.0, %v746
        %v748 = vpop.f32.mrb[0].mxu0
        %749 = vmatprep.mubr.f32.mxu0 0.0
        %750 = vmatmul.mubr.f32.gmra.mrb[0].mxu0 %v652
        %v751 = vpop.f32.mrb[0].mxu0
        %v752 = vadd.f32 0.0, %v751
        %v753 = vpop.f32.mrb[0].mxu0
        %754 = vmatprep.mubr.f32.mxu0 0.0
        %755 = vmatmul.mubr.f32.gmra.mrb[0].mxu0 %v655
        %v756 = vpop.f32.mrb[0].mxu0
        %v757 = vadd.f32 0.0, %v756
        %v758 = vpop.f32.mrb[0].mxu0
        %759 = vmatprep.mubr.f32.mxu0 0.0
        %760 = vmatmul.mubr.f32.gmra.mrb[0].mxu0 %v658
        %v761 = vpop.f32.mrb[0].mxu0
        %v762 = vadd.f32 0.0, %v761
        %v763 = vpop.f32.mrb[0].mxu0
        %764 = vdwg.mxu0
        %v765 = vld [vmem:[%s6] sm:$0x1]
        %v767 = vlaneseq
        %v768 = vshrl.u32 %v767, 7
        %v769 = vsub.s32 0, %v768
        %v770 = vrot.slane %v765, %v769
        %v772 = vadd.f32 %v727, %v770
        %v773 = vadd.f32 %v732, %v770
        %v774 = vadd.f32 %v737, %v770
        %v775 = vadd.f32 %v742, %v770
        %v776 = vadd.f32 %v747, %v770
        %v777 = vadd.f32 %v752, %v770
        %v778 = vadd.f32 %v757, %v770
        %v779 = vadd.f32 %v762, %v770
        %v780 = vld [vmem:[%s429] sm:$0xff]
        %v781 = vld [vmem:[%s429 + $0x8] sm:$0xff]
        %v782 = vld [vmem:[%s429 + $0x10] sm:$0xff]
        %v783 = vld [vmem:[%s429 + $0x18] sm:$0xff]
        %v784 = vld [vmem:[%s429 + $0x20] sm:$0xff]
        %v785 = vld [vmem:[%s429 + $0x28] sm:$0xff]
        %v786 = vld [vmem:[%s429 + $0x30] sm:$0xff]
        %v787 = vld [vmem:[%s429 + $0x38] sm:$0xff]
        %v788 = vsel %vm635, %v780, 0.0
        %789 = vadd.xlane.f32.xlu0 %v788
        %v790 = vpop.xlane.xlu0 %789
        %v791 = vsel %vm635, %v781, 0.0
        %792 = vadd.xlane.f32.xlu0 %v791
        %v793 = vpop.xlane.xlu0 %792
        %v794 = vsel %vm635, %v782, 0.0
        %795 = vadd.xlane.f32.xlu0 %v794
        %v796 = vpop.xlane.xlu0 %795
        %v797 = vsel %vm635, %v783, 0.0
        %798 = vadd.xlane.f32.xlu0 %v797
        %v799 = vpop.xlane.xlu0 %798
        %v800 = vsel %vm635, %v784, 0.0
        %801 = vadd.xlane.f32.xlu0 %v800
        %v802 = vpop.xlane.xlu0 %801
        %v803 = vsel %vm635, %v785, 0.0
        %804 = vadd.xlane.f32.xlu0 %v803
        %v805 = vpop.xlane.xlu0 %804
        %v806 = vsel %vm635, %v786, 0.0
        %807 = vadd.xlane.f32.xlu0 %v806
        %v808 = vpop.xlane.xlu0 %807
        %v809 = vsel %vm635, %v787, 0.0
        %810 = vadd.xlane.f32.xlu0 %v809
        %v811 = vpop.xlane.xlu0 %810
        %v812 = vmul.f32 %v790, 0.125
        %v813 = vmul.f32 %v793, 0.125
        %v814 = vmul.f32 %v796, 0.125
        %v815 = vmul.f32 %v799, 0.125
        %v816 = vmul.f32 %v802, 0.125
        %v817 = vmul.f32 %v805, 0.125
        %v818 = vmul.f32 %v808, 0.125
        %v819 = vmul.f32 %v811, 0.125
        %v820 = vsub.f32 %v780, %v812
        %v821 = vsub.f32 %v781, %v813
        %v822 = vsub.f32 %v782, %v814
        %v823 = vsub.f32 %v783, %v815
        %v824 = vsub.f32 %v784, %v816
        %v825 = vsub.f32 %v785, %v817
        %v826 = vsub.f32 %v786, %v818
        %v827 = vsub.f32 %v787, %v819
        %v828 = vmul.f32 %v820, %v820
        %v829 = vmul.f32 %v821, %v821
        %v830 = vmul.f32 %v822, %v822
        %v831 = vmul.f32 %v823, %v823
        %v832 = vmul.f32 %v824, %v824
        %v833 = vmul.f32 %v825, %v825
        %v834 = vmul.f32 %v826, %v826
        %v835 = vmul.f32 %v827, %v827
        %v836 = vsel %vm635, %v828, 0.0
        %837 = vadd.xlane.f32.xlu0 %v836
        %v838 = vpop.xlane.xlu0 %837
        %v839 = vsel %vm635, %v829, 0.0
        %840 = vadd.xlane.f32.xlu0 %v839
        %v841 = vpop.xlane.xlu0 %840
        %v842 = vsel %vm635, %v830, 0.0
        %843 = vadd.xlane.f32.xlu0 %v842
        %v844 = vpop.xlane.xlu0 %843
        %v845 = vsel %vm635, %v831, 0.0
        %846 = vadd.xlane.f32.xlu0 %v845
        %v847 = vpop.xlane.xlu0 %846
        %v848 = vsel %vm635, %v832, 0.0
        %849 = vadd.xlane.f32.xlu0 %v848
        %v850 = vpop.xlane.xlu0 %849
        %v851 = vsel %vm635, %v833, 0.0
        %852 = vadd.xlane.f32.xlu0 %v851
        %v853 = vpop.xlane.xlu0 %852
        %v854 = vsel %vm635, %v834, 0.0
        %855 = vadd.xlane.f32.xlu0 %v854
        %v856 = vpop.xlane.xlu0 %855
        %v857 = vsel %vm635, %v835, 0.0
        %858 = vadd.xlane.f32.xlu0 %v857
        %v859 = vpop.xlane.xlu0 %858
        %v860 = vmul.f32 %v838, 0.125
        %v861 = vmul.f32 %v841, 0.125
        %v862 = vmul.f32 %v844, 0.125
        %v863 = vmul.f32 %v847, 0.125
        %v864 = vmul.f32 %v850, 0.125
        %v865 = vmul.f32 %v853, 0.125
        %v866 = vmul.f32 %v856, 0.125
        %v867 = vmul.f32 %v859, 0.125
        %v868 = vadd.f32 %v860, 1e-05
        %v869 = vadd.f32 %v861, 1e-05
        %v870 = vadd.f32 %v862, 1e-05
        %v871 = vadd.f32 %v863, 1e-05
        %v872 = vadd.f32 %v864, 1e-05
        %v873 = vadd.f32 %v865, 1e-05
        %v874 = vadd.f32 %v866, 1e-05
        %v875 = vadd.f32 %v867, 1e-05
        %v876 = vrsqrt.pop %v868
        %v877 = vrsqrt.pop %v869
        %v878 = vrsqrt.pop %v870
        %v879 = vrsqrt.pop %v871
        %v880 = vrsqrt.pop %v872
        %v881 = vrsqrt.pop %v873
        %v882 = vrsqrt.pop %v874
        %v883 = vrsqrt.pop %v875
        %v884 = vld [vmem:[%s9] sm:$0x1]
        %v885 = vmul.f32 %v820, %v876
        %v886 = vmul.f32 %v821, %v877
        %v887 = vmul.f32 %v822, %v878
        %v888 = vmul.f32 %v823, %v879
        %v889 = vmul.f32 %v824, %v880
        %v890 = vmul.f32 %v825, %v881
        %v891 = vmul.f32 %v826, %v882
        %v892 = vmul.f32 %v827, %v883
        %v894 = vlaneseq
        %v895 = vshrl.u32 %v894, 7
        %v896 = vsub.s32 0, %v895
        %v897 = vrot.slane %v884, %v896
        %v899 = vmul.f32 %v885, %v897
        %v900 = vmul.f32 %v886, %v897
        %v901 = vmul.f32 %v887, %v897
        %v902 = vmul.f32 %v888, %v897
        %v903 = vmul.f32 %v889, %v897
        %v904 = vmul.f32 %v890, %v897
        %v905 = vmul.f32 %v891, %v897
        %v906 = vmul.f32 %v892, %v897
        %v907 = vadd.f32 %v899, %v772
        %v908 = vadd.f32 %v900, %v773
        %v909 = vadd.f32 %v901, %v774
        %v910 = vadd.f32 %v902, %v775
        %v911 = vadd.f32 %v903, %v776
        %v912 = vadd.f32 %v904, %v777
        %v913 = vadd.f32 %v905, %v778
        %v914 = vadd.f32 %v906, %v779
        %915 = vst.msk [vmem:[%s490] sm:$0xff] %vm635, %v907
        %916 = vst.msk [vmem:[%s490 + $0x8] sm:$0xff] %vm635, %v908
        %917 = vst.msk [vmem:[%s490 + $0x10] sm:$0xff] %vm635, %v909
        %918 = vst.msk [vmem:[%s490 + $0x18] sm:$0xff] %vm635, %v910
        %919 = vst.msk [vmem:[%s490 + $0x20] sm:$0xff] %vm635, %v911
        %920 = vst.msk [vmem:[%s490 + $0x28] sm:$0xff] %vm635, %v912
        %921 = vst.msk [vmem:[%s490 + $0x30] sm:$0xff] %vm635, %v913
        %922 = vst.msk [vmem:[%s490 + $0x38] sm:$0xff] %vm635, %v914
        %v923 = vld [vmem:[%s497] sm:$0xff]
        %vm924 = vcmask 130048
        %v925 = vsel %vm924, %v923, 0.0
        %926 = vadd.xlane.f32.xlu0 %v925
        %v927 = vpop.xlane.xlu0 %926
        %v928 = vmul.f32 %v927, 0.0625
        %v929 = vsub.f32 %v923, %v928
        %v930 = vmul.f32 %v929, %v929
        %v931 = vsel %vm924, %v930, 0.0
        %932 = vadd.xlane.f32.xlu0 %v931
        %v933 = vpop.xlane.xlu0 %932
        %v934 = vmul.f32 %v933, 0.0625
        %v935 = vadd.f32 %v934, 1e-05
        %v936 = vrsqrt.pop %v935
        %v937 = vmul.f32 %v929, %v936
        %v938 = vld [vmem:[%s7] sm:$0x1]
        %v940 = vlaneseq
        %v941 = vshrl.u32 %v940, 7
        %v942 = vsub.s32 0, %v941
        %v943 = vrot.slane %v938, %v942
        %v945 = vmul.f32 %v937, %v943
        %v946 = vld [vmem:[%s8] sm:$0x1]
        %v948 = vlaneseq
        %v949 = vshrl.u32 %v948, 7
        %v950 = vsub.s32 0, %v949
        %v951 = vrot.slane %v946, %v950
        %v953 = vadd.f32 %v945, %v951
        %954 = vst.msk [vmem:[%s483] sm:$0xff] %vm924, %v953
        %s955 = sand.u32 %s290, 1
        %s956 = scalar_lea.sflag [#allocation4], %s955
        %s957 = sand.u32 %s290, 1
        %s958 = smul.addr %s957, 8
        %s959 = scalar_lea.vmem [#allocation5], %s958
        %s960 = sand.u32 %s318, 1
        %s961 = scalar_lea.sflag [#allocation7], %s960
        %s962 = sand.u32 %s318, 1
        %s963 = smul.addr %s962, 64
        %s964 = scalar_lea.vmem [#allocation6], %s963
        // Predicated region
        $region65: #{tpu_custom_call.1} parent=59 // pred_check
          %p965 = pneg %p300
        $region66: #{tpu_custom_call.1} parent=59 // pred_check_branch
          %967 = sbr.rel (%p965) target = $region68
        $region67: #{tpu_custom_call.1} parent=59 // pred_region
          %s969 = ssub.s32 128, 128
          %970 = vsyncadd %s956, %s969
          %s971 = sadd.s32 %s37, %s36
          %s972 = smul.addr %s971, 128
          %s973 = scalar_lea.hbm %s10, %s972
          %s975 = sshll.u32 %s959, 4
          %s976 = int_to_ptr.vmem [resolvable:$true] %s975
          %978 = dma.vmem_to_hbm [thread:$0]  %s976, 128, %s973, %s956
        $region68: #{tpu_custom_call.1} parent=59 // pred_fallthru
          _
        // Predicated region
        $region69: #{tpu_custom_call.1} parent=59 // pred_check
          %p979 = pneg %p328
        $region70: #{tpu_custom_call.1} parent=59 // pred_check_branch
          %981 = sbr.rel (%p979) target = $region72
        $region71: #{tpu_custom_call.1} parent=59 // pred_region
          %s982 = smul.u32 8, %s37
          %s984 = ssub.s32 1024, 1024
          %985 = vsyncadd %s961, %s984
          %s986 = smul.addr %s36, 8
          %s987 = sadd.s32 %s982, %s986
          %s988 = smul.addr %s987, 128
          %s989 = scalar_lea.hbm %s11, %s988
          %s990 = sshll.u32 %s964, 4
          %s991 = int_to_ptr.vmem [resolvable:$true] %s990
          %996 = dma.vmem_to_hbm [thread:$0]  %s991, 1024, %s989, %s961, 128, 128, 8
        $region72: #{tpu_custom_call.1} parent=59 // pred_fallthru
          _
      $region60: #{tpu_custom_call.1} parent=5 // pred_fallthru
        _
      %p997 = scmp.le.s32.totalorder 2, %s27
      // Predicated region
      $region73: #{tpu_custom_call.1} parent=5 // pred_check
        %p998 = pneg %p997
      $region74: #{tpu_custom_call.1} parent=5 // pred_check_branch
        %1000 = sbr.rel (%p998) target = $region76
      $region75: #{tpu_custom_call.1} parent=5 // pred_region
        %s1001 = ssub.s32 %s27, 2
        // Predicated region
        $region77: #{tpu_custom_call.1} parent=75 // pred_check
          %p1002 = pneg %p306
        $region78: #{tpu_custom_call.1} parent=75 // pred_check_branch
          %1004 = sbr.rel (%p1002) target = $region80
        $region79: #{tpu_custom_call.1} parent=75 // pred_region
          %s1005 = sand.u32 %s291, 1
          %s1006 = scalar_lea.sflag [#allocation4], %s1005
          %s1007 = sand.u32 %s291, 1
          %s1008 = smul.addr %s1007, 8
          %s1009 = scalar_lea.vmem [#allocation5], %s1008
          %1010 = dma.done %s1006, 128
        $region80: #{tpu_custom_call.1} parent=75 // pred_fallthru
          _
        // Predicated region
        $region81: #{tpu_custom_call.1} parent=75 // pred_check
          %p1011 = pneg %p334
        $region82: #{tpu_custom_call.1} parent=75 // pred_check_branch
          %1013 = sbr.rel (%p1011) target = $region84
        $region83: #{tpu_custom_call.1} parent=75 // pred_region
          %s1014 = sand.u32 %s319, 1
          %s1015 = scalar_lea.sflag [#allocation7], %s1014
          %s1016 = sand.u32 %s319, 1
          %s1017 = smul.addr %s1016, 64
          %s1018 = scalar_lea.vmem [#allocation6], %s1017
          %1019 = dma.done %s1015, 1024
        $region84: #{tpu_custom_call.1} parent=75 // pred_fallthru
          _
      $region76: #{tpu_custom_call.1} parent=5 // pred_fallthru
        _
    $region6: #{tpu_custom_call.1} parent=1 // loop_footer
      %s31 = sadd.s32 1, %s27
    $region7: #{tpu_custom_call.1} parent=1 // loop_footer_branch
      %26 = sbr.rel target = $region3
    $region8: #{tpu_custom_call.1} parent=1 // loop_exit
      _
    %1020 = vsyncpa [#allocation3], 1
    %s1021 = scalar_lea.sflag [#allocation3], 1
    %1022 = vsyncpa %s1021, 1
    %1023 = vsyncpa [#allocation4], 1
    %s1024 = scalar_lea.sflag [#allocation4], 1
    %1025 = vsyncpa %s1024, 1
    %1026 = vsyncpa [#allocation7], 1
    %s1027 = scalar_lea.sflag [#allocation7], 1
    %1028 = vsyncpa %s1027, 1

</llo_original>
